<compile_context>
chip_gen: v7x
topology: tpu7x:2x2x1
jax: 0.10.0
libtpu: 0.0.40
codegen_flags: <defaults>
</compile_context>

<pallas_src>
import math

import jax
import jax.numpy as jnp
from jax.experimental import pallas as pl
from jax.experimental.pallas import tpu as pltpu


def _make_mha_kernel(n_heads, d_k, has_mask):
    """Flash-style multi-head attention kernel (heads batched inside the block)."""

    def kernel(*refs):
        if has_mask:
            (q_ref, k_ref, v_ref, mask_ref, wo_ref, bo_ref, o_ref,
             m_sc, l_sc, acc_sc, ctx_sc) = refs
        else:
            (q_ref, k_ref, v_ref, wo_ref, bo_ref, o_ref,
             m_sc, l_sc, acc_sc, ctx_sc) = refs
            mask_ref = None

        f32 = jnp.float32
        bf16 = jnp.bfloat16
        ki = pl.program_id(2)

        @pl.when(ki == 0)
        def _init():
            m_sc[...] = jnp.full(m_sc.shape, -jnp.inf, dtype=f32)
            l_sc[...] = jnp.zeros(l_sc.shape, dtype=f32)
            acc_sc[...] = jnp.zeros(acc_sc.shape, dtype=f32)

        q = q_ref[0]          # (H, TQ, d_k) bf16, 1/sqrt(d_k) already folded in
        k = k_ref[0]          # (H, TK, d_k) bf16
        v = v_ref[0]          # (H, TK, d_k) bf16

        # scores: batched over heads, contraction on d_k, f32 accumulation.
        s = jnp.einsum("hqd,hkd->hqk", q, k, preferred_element_type=f32)

        if has_mask:
            # identical to `x*mask - 1e9*(1-mask)` for 0/1 masks: fully masked
            # rows become uniform after softmax, matching the PyTorch module.
            s = jnp.where((mask_ref[0] != 0)[None, :, :], s, -1.0e9)

        # online (flash) softmax update, kept in f32.
        m_prev = m_sc[...]                                        # (H, TQ, 1)
        m_new = jnp.maximum(m_prev, jnp.max(s, axis=-1, keepdims=True))
        alpha = jnp.exp(m_prev - m_new)
        p = jnp.exp(s - m_new)                                    # (H, TQ, TK)
        l_sc[...] = alpha * l_sc[...] + jnp.sum(p, axis=-1, keepdims=True)
        acc_sc[...] = alpha * acc_sc[...] + jnp.einsum(
            "hqk,hkd->hqd", p.astype(bf16), v, preferred_element_type=f32)
        m_sc[...] = m_new

        @pl.when(ki == pl.num_programs(2) - 1)
        def _finalize():
            inv_l = pl.reciprocal(l_sc[...], approx=True)         # EUP slot
            ctx = acc_sc[...] * inv_l                             # (H, TQ, d_k) f32
            # Pack head contexts into a lane-dense (TQ, U) buffer (static lane
            # slices), then a single full-width W_o GEMM (contraction = U).
            for h in range(n_heads):
                ctx_sc[:, h * d_k:(h + 1) * d_k] = ctx[h]
            o_ref[0] = (jnp.dot(ctx_sc[...].astype(bf16), wo_ref[...],
                                preferred_element_type=f32)
                        + bo_ref[...])

    return kernel


def _pick_tile(size, target, step):
    """Largest multiple of `step` that is <= target and divides `size`, else full."""
    if size <= target:
        return size
    t = (target // step) * step
    while t >= step:
        if size % t == 0:
            return t
        t -= step
    return size


def multi_headed_attention(query, key, value, params, *, n_heads, mask=None,
                           tq=None, tk=None):
    """query/key/value: (B, S, U) float32.  mask: (B, S, S) (0/1) or None."""
    B, S, U = query.shape
    assert U % n_heads == 0
    d_k = U // n_heads
    wq, bq, wk, bk, wv, bv, wo, bo = params

    # ---- host side: full-width projection GEMMs (done once, not per q-tile) ----
    scale = 1.0 / math.sqrt(d_k)
    q_p = query @ (wq * scale) + (bq * scale)     # scale folded into W_q / b_q
    k_p = key @ wk + bk
    v_p = value @ wv + bv

    def to_heads(x):                              # (B,S,U) f32 -> (B,H,S,d_k) bf16
        return jnp.transpose(x.reshape(B, S, n_heads, d_k),
                             (0, 2, 1, 3)).astype(jnp.bfloat16)

    q_h, k_h, v_h = to_heads(q_p), to_heads(k_p), to_heads(v_p)
    wo_b = wo.astype(jnp.bfloat16)                # (U, U)
    bo_f = bo.astype(jnp.float32)                 # (1, U)

    # ---- VMEM-aware tiling / limits (v7x has 64 MiB, v5e/v6e 128 MiB) ----
    vmem_cap = 64 * 1024 * 1024
    try:
        vmem_cap = int(pltpu.get_tpu_info().vmem_capacity_bytes)
    except Exception:
        pass
    if vmem_cap > 96 * 1024 * 1024:               # v5e / v6e
        vmem_limit = min(int(vmem_cap * 0.78), 100 * 1024 * 1024)
        tq_target, tk_target = 512, 512
    else:                                         # v7x (or unknown -> conservative)
        vmem_limit = 40 * 1024 * 1024
        tq_target, tk_target = 256, 256

    TQ = tq if tq is not None else _pick_tile(S, tq_target, 8)
    TK = tk if tk is not None else _pick_tile(S, tk_target, 128)
    if S % TQ != 0:
        TQ = S
    if S % TK != 0:
        TK = S
    n_qt, n_kt = S // TQ, S // TK

    has_mask = mask is not None

    q_spec = pl.BlockSpec((1, n_heads, TQ, d_k), lambda b, qi, ki: (b, 0, qi, 0))
    kv_spec = pl.BlockSpec((1, n_heads, TK, d_k), lambda b, qi, ki: (b, 0, ki, 0))
    wo_spec = pl.BlockSpec((U, U), lambda b, qi, ki: (0, 0))
    bo_spec = pl.BlockSpec((1, U), lambda b, qi, ki: (0, 0))
    out_spec = pl.BlockSpec((1, TQ, U), lambda b, qi, ki: (b, qi, 0))

    in_specs = [q_spec, kv_spec, kv_spec]
    args = [q_h, k_h, v_h]
    if has_mask:
        in_specs.append(pl.BlockSpec((1, TQ, TK), lambda b, qi, ki: (b, qi, ki)))
        args.append((mask != 0).astype(jnp.int8))   # int8: 4x less HBM than f32
    in_specs += [wo_spec, bo_spec]
    args += [wo_b, bo_f]

    kernel = _make_mha_kernel(n_heads, d_k, has_mask)

    return pl.pallas_call(
        kernel,
        out_shape=jax.ShapeDtypeStruct((B, S, U), jnp.float32),
        grid_spec=pltpu.PrefetchScalarGridSpec(
            num_scalar_prefetch=0,
            grid=(B, n_qt, n_kt),
            in_specs=in_specs,
            out_specs=out_spec,
            scratch_shapes=[
                pltpu.VMEM((n_heads, TQ, 1), jnp.float32),    # running max
                pltpu.VMEM((n_heads, TQ, 1), jnp.float32),    # running denom
                pltpu.VMEM((n_heads, TQ, d_k), jnp.float32),  # running context
                pltpu.VMEM((TQ, U), jnp.float32),             # lane-dense ctx for W_o
            ]),
        compiler_params=pltpu.CompilerParams(
            dimension_semantics=("parallel", "parallel", "arbitrary"),
            vmem_limit_bytes=vmem_limit),
    )(*args)


def init_params(key, n_units):
    """Uniform(-k, k) init mirroring MultiHeadedAttention.init_weights.
    Weights are returned already transposed to (in, out) so that x @ W applies."""
    k = math.sqrt(1.0 / n_units)
    keys = jax.random.split(key, 8)

    def w(kk):
        return jax.random.uniform(kk, (n_units, n_units), jnp.float32, -k, k)

    def b(kk):
        return jax.random.uniform(kk, (1, n_units), jnp.float32, -k, k)

    wq, bq = w(keys[0]), b(keys[1])
    wk, bk = w(keys[2]), b(keys[3])
    wv, bv = w(keys[4]), b(keys[5])
    wo, bo = w(keys[6]), b(keys[7])
    return (wq, bq, wk, bk, wv, bv, wo, bo)


def mha_reference(query, key, value, params, *, n_heads, mask=None):
    """Pure-JAX f32 reference reproducing the PyTorch forward (eval mode)."""
    B, S, U = query.shape
    d_k = U // n_heads
    wq, bq, wk, bk, wv, bv, wo, bo = params

    def proj(x, w, b):
        y = x @ w + b
        return y.reshape(B, S, n_heads, d_k).transpose(0, 2, 1, 3)   # (B,H,S,d_k)

    Q = proj(query, wq, bq)
    K = proj(key, wk, bk)
    V = proj(value, wv, bv)

    s = jnp.einsum("bhqd,bhkd->bhqk", Q, K) / math.sqrt(d_k)
    if mask is not None:
        m = mask.astype(jnp.float32)[:, None, :, :]
        s = s * m - 1.0e9 * (1.0 - m)
    p = jax.nn.softmax(s, axis=-1)
    x = jnp.einsum("bhqk,bhkd->bhqd", p, V)
    x = x.transpose(0, 2, 1, 3).reshape(B, S, U)
    return x @ wo + bo


if __name__ == "__main__":
    B, S, U, H = 2, 8, 32, 4

    root = jax.random.PRNGKey(0)
    k_params, k_q, k_k, k_v = jax.random.split(root, 4)

    params = init_params(k_params, U)
    query = jax.random.normal(k_q, (B, S, U), jnp.float32)
    key = jax.random.normal(k_k, (B, S, U), jnp.float32)
    value = jax.random.normal(k_v, (B, S, U), jnp.float32)

    # Causal mask (as the module would receive from a transformer LM).
    mask = jnp.tril(jnp.ones((S, S), jnp.float32))[None].repeat(B, axis=0)

    out = multi_headed_attention(query, key, value, params, n_heads=H, mask=mask)
    out = jax.block_until_ready(out)

    ref = mha_reference(query, key, value, params, n_heads=H, mask=mask)
    assert out.shape == (B, S, U)
    # bf16 MXU operands + approx reciprocal vs pure-f32 reference -> relaxed tol.
    assert jnp.allclose(out, ref, atol=5e-2, rtol=5e-2), "mismatch vs JAX reference"

    # Also exercise the specialized mask=None path.
    out_nm = multi_headed_attention(query, key, value, params, n_heads=H, mask=None)
    out_nm = jax.block_until_ready(out_nm)
    ref_nm = mha_reference(query, key, value, params, n_heads=H, mask=None)
    assert jnp.allclose(out_nm, ref_nm, atol=5e-2, rtol=5e-2), "mismatch (no mask)"

    print("KERNEL_OK")
</pallas_src>

<mosaic_0001>
module attributes {stable_mosaic.version = 11 : i64} {
  func.func @kernel(%arg0: i32, %arg1: i32, %arg2: i32, %arg3: memref<1x4x8x8xbf16, #tpu.memory_space<vmem>>, %arg4: memref<1x4x8x8xbf16, #tpu.memory_space<vmem>>, %arg5: memref<1x4x8x8xbf16, #tpu.memory_space<vmem>>, %arg6: memref<1x8x8xi8, #tpu.memory_space<vmem>>, %arg7: memref<32x32xbf16, #tpu.memory_space<vmem>>, %arg8: memref<1x32xf32, #tpu.memory_space<vmem>>, %arg9: memref<1x8x32xf32, #tpu.memory_space<vmem>>, %arg10: memref<4x8x1xf32, #tpu.memory_space<vmem>>, %arg11: memref<4x8x1xf32, #tpu.memory_space<vmem>>, %arg12: memref<4x8x8xf32, #tpu.memory_space<vmem>>, %arg13: memref<8x32xf32, #tpu.memory_space<vmem>>) attributes {dimension_semantics = [#tpu.dimension_semantics<parallel>, #tpu.dimension_semantics<parallel>, #tpu.dimension_semantics<arbitrary>], iteration_bounds = array<i64: 2, 1, 1>, scalar_prefetch = 0 : i64, scratch_operands = 4 : i64, tpu.core_type = #tpu.core_type<tc>, window_params = [{transform_indices = @transform_0, window_bounds = array<i64: 1, 4, 8, 8>}, {transform_indices = @transform_1, window_bounds = array<i64: 1, 4, 8, 8>}, {transform_indices = @transform_2, window_bounds = array<i64: 1, 4, 8, 8>}, {transform_indices = @transform_3, window_bounds = array<i64: 1, 8, 8>}, {pipeline_mode = #tpu.pipeline_mode<synchronous>, transform_indices = @transform_4, window_bounds = array<i64: 32, 32>}, {pipeline_mode = #tpu.pipeline_mode<synchronous>, transform_indices = @transform_5, window_bounds = array<i64: 1, 32>}, {transform_indices = @transform_6, window_bounds = array<i64: 1, 8, 32>}]} {
    %c0_i32 = arith.constant 0 : i32
    %0 = arith.cmpi eq, %arg2, %c0_i32 : i32
    %1 = arith.extui %0 : i1 to i32
    %c0_i32_0 = arith.constant 0 : i32
    %2 = arith.cmpi ne, %1, %c0_i32_0 : i32
    scf.if %2 {
      %cst_39 = arith.constant 0xFF800000 : f32
      %45 = vector.broadcast %cst_39 : f32 to vector<4x8x1xf32>
      %c0_40 = arith.constant 0 : index
      %c0_41 = arith.constant 0 : index
      %c0_42 = arith.constant 0 : index
      %46 = vector.load %arg10[%c0_40, %c0_41, %c0_42] : memref<4x8x1xf32, #tpu.memory_space<vmem>>, vector<4x8x1xf32>
      tpu.vector_store %arg10[%c0_40, %c0_41, %c0_42], %45 {strides = array<i32>} : memref<4x8x1xf32, #tpu.memory_space<vmem>>, vector<4x8x1xf32>,
      %cst_43 = arith.constant 0.000000e+00 : f32
      %47 = vector.broadcast %cst_43 : f32 to vector<4x8x1xf32>
      %c0_44 = arith.constant 0 : index
      %c0_45 = arith.constant 0 : index
      %c0_46 = arith.constant 0 : index
      %48 = vector.load %arg11[%c0_44, %c0_45, %c0_46] : memref<4x8x1xf32, #tpu.memory_space<vmem>>, vector<4x8x1xf32>
      tpu.vector_store %arg11[%c0_44, %c0_45, %c0_46], %47 {strides = array<i32>} : memref<4x8x1xf32, #tpu.memory_space<vmem>>, vector<4x8x1xf32>,
      %cst_47 = arith.constant 0.000000e+00 : f32
      %49 = vector.broadcast %cst_47 : f32 to vector<4x8x8xf32>
      %c0_48 = arith.constant 0 : index
      %c0_49 = arith.constant 0 : index
      %c0_50 = arith.constant 0 : index
      %50 = vector.load %arg12[%c0_48, %c0_49, %c0_50] : memref<4x8x8xf32, #tpu.memory_space<vmem>>, vector<4x8x8xf32>
      tpu.vector_store %arg12[%c0_48, %c0_49, %c0_50], %49 {strides = array<i32>} : memref<4x8x8xf32, #tpu.memory_space<vmem>>, vector<4x8x8xf32>,
    } else {
    }
    %c0 = arith.constant 0 : index
    %c0_1 = arith.constant 0 : index
    %c0_2 = arith.constant 0 : index
    %c0_3 = arith.constant 0 : index
    %3 = vector.load %arg3[%c0, %c0_1, %c0_2, %c0_3] : memref<1x4x8x8xbf16, #tpu.memory_space<vmem>>, vector<1x4x8x8xbf16>
    %4 = vector.shape_cast %3 : vector<1x4x8x8xbf16> to vector<4x8x8xbf16>
    %c0_4 = arith.constant 0 : index
    %c0_5 = arith.constant 0 : index
    %c0_6 = arith.constant 0 : index
    %c0_7 = arith.constant 0 : index
    %5 = vector.load %arg4[%c0_4, %c0_5, %c0_6, %c0_7] : memref<1x4x8x8xbf16, #tpu.memory_space<vmem>>, vector<1x4x8x8xbf16>
    %6 = vector.shape_cast %5 : vector<1x4x8x8xbf16> to vector<4x8x8xbf16>
    %c0_8 = arith.constant 0 : index
    %c0_9 = arith.constant 0 : index
    %c0_10 = arith.constant 0 : index
    %c0_11 = arith.constant 0 : index
    %7 = vector.load %arg5[%c0_8, %c0_9, %c0_10, %c0_11] : memref<1x4x8x8xbf16, #tpu.memory_space<vmem>>, vector<1x4x8x8xbf16>
    %8 = vector.shape_cast %7 : vector<1x4x8x8xbf16> to vector<4x8x8xbf16>
    "tpu.trace_start"() <{level = 10 : i32, message = "hqd,hkd->hqk"}> : () -> ()
    %cst = arith.constant dense<0.000000e+00> : vector<4x8x8xf32>
    %9 = tpu.matmul %4, %6, %cst {dimension_numbers = #tpu.dot_dimension_numbers<[2], [2], [1], [1], [0, 0, 0, 1, 1, 1], [0], [0]>} : vector<4x8x8xbf16>, vector<4x8x8xbf16>, vector<4x8x8xf32> -> vector<4x8x8xf32>
    "tpu.trace_stop"() : () -> ()
    %c0_12 = arith.constant 0 : index
    %c0_13 = arith.constant 0 : index
    %c0_14 = arith.constant 0 : index
    %10 = vector.load %arg6[%c0_12, %c0_13, %c0_14] : memref<1x8x8xi8, #tpu.memory_space<vmem>>, vector<1x8x8xi8>
    %11 = vector.shape_cast %10 : vector<1x8x8xi8> to vector<8x8xi8>
    %c0_i8 = arith.constant 0 : i8
    %12 = vector.broadcast %c0_i8 : i8 to vector<8x8xi8>
    %13 = arith.cmpi ne, %11, %12 : vector<8x8xi8>
    %14 = vector.shape_cast %13 : vector<8x8xi1> to vector<1x8x8xi1>
    %cst_15 = arith.constant -1.000000e+09 : f32
    %15 = vector.shape_cast %14 : vector<1x8x8xi1> to vector<1x8x8xi1>
    %16 = vector.broadcast %15 : vector<1x8x8xi1> to vector<4x8x8xi1>
    %17 = vector.broadcast %cst_15 : f32 to vector<4x8x8xf32>
    %18 = arith.select %16, %9, %17 : vector<4x8x8xi1>, vector<4x8x8xf32>
    %c0_16 = arith.constant 0 : index
    %c0_17 = arith.constant 0 : index
    %c0_18 = arith.constant 0 : index
    %19 = vector.load %arg10[%c0_16, %c0_17, %c0_18] : memref<4x8x1xf32, #tpu.memory_space<vmem>>, vector<4x8x1xf32>
    %cst_19 = arith.constant dense<0xFF800000> : vector<4x8xf32>
    %20 = vector.multi_reduction <maximumf>, %18, %cst_19 [2] : vector<4x8x8xf32> to vector<4x8xf32>
    %21 = vector.shape_cast %20 : vector<4x8xf32> to vector<4x8x1xf32>
    %22 = arith.maximumf %19, %21 : vector<4x8x1xf32>
    %23 = arith.subf %19, %22 : vector<4x8x1xf32>
    %24 = math.exp %23 : vector<4x8x1xf32>
    %25 = vector.broadcast %22 : vector<4x8x1xf32> to vector<4x8x8xf32>
    %26 = arith.subf %18, %25 : vector<4x8x8xf32>
    %27 = math.exp %26 : vector<4x8x8xf32>
    %c0_20 = arith.constant 0 : index
    %c0_21 = arith.constant 0 : index
    %c0_22 = arith.constant 0 : index
    %28 = vector.load %arg11[%c0_20, %c0_21, %c0_22] : memref<4x8x1xf32, #tpu.memory_space<vmem>>, vector<4x8x1xf32>
    %29 = arith.mulf %24, %28 : vector<4x8x1xf32>
    %cst_23 = arith.constant dense<0.000000e+00> : vector<4x8xf32>
    %30 = vector.multi_reduction <add>, %27, %cst_23 [2] : vector<4x8x8xf32> to vector<4x8xf32>
    %31 = vector.shape_cast %30 : vector<4x8xf32> to vector<4x8x1xf32>
    %32 = arith.addf %29, %31 : vector<4x8x1xf32>
    %c0_24 = arith.constant 0 : index
    %c0_25 = arith.constant 0 : index
    %c0_26 = arith.constant 0 : index
    %33 = vector.load %arg11[%c0_24, %c0_25, %c0_26] : memref<4x8x1xf32, #tpu.memory_space<vmem>>, vector<4x8x1xf32>
    tpu.vector_store %arg11[%c0_24, %c0_25, %c0_26], %32 {strides = array<i32>} : memref<4x8x1xf32, #tpu.memory_space<vmem>>, vector<4x8x1xf32>,
    %c0_27 = arith.constant 0 : index
    %c0_28 = arith.constant 0 : index
    %c0_29 = arith.constant 0 : index
    %34 = vector.load %arg12[%c0_27, %c0_28, %c0_29] : memref<4x8x8xf32, #tpu.memory_space<vmem>>, vector<4x8x8xf32>
    %35 = vector.broadcast %24 : vector<4x8x1xf32> to vector<4x8x8xf32>
    %36 = arith.mulf %35, %34 : vector<4x8x8xf32>
    %37 = arith.truncf %27 : vector<4x8x8xf32> to vector<4x8x8xbf16>
    "tpu.trace_start"() <{level = 10 : i32, message = "hqk,hkd->hqd"}> : () -> ()
    %cst_30 = arith.constant dense<0.000000e+00> : vector<4x8x8xf32>
    %38 = tpu.matmul %37, %8, %cst_30 {dimension_numbers = #tpu.dot_dimension_numbers<[2], [1], [1], [2], [0, 0, 0, 1, 1, 2], [0], [0]>} : vector<4x8x8xbf16>, vector<4x8x8xbf16>, vector<4x8x8xf32> -> vector<4x8x8xf32>
    "tpu.trace_stop"() : () -> ()
    %39 = arith.addf %36, %38 : vector<4x8x8xf32>
    %c0_31 = arith.constant 0 : index
    %c0_32 = arith.constant 0 : index
    %c0_33 = arith.constant 0 : index
    %40 = vector.load %arg12[%c0_31, %c0_32, %c0_33] : memref<4x8x8xf32, #tpu.memory_space<vmem>>, vector<4x8x8xf32>
    tpu.vector_store %arg12[%c0_31, %c0_32, %c0_33], %39 {strides = array<i32>} : memref<4x8x8xf32, #tpu.memory_space<vmem>>, vector<4x8x8xf32>,
    %c0_34 = arith.constant 0 : index
    %c0_35 = arith.constant 0 : index
    %c0_36 = arith.constant 0 : index
    %41 = vector.load %arg10[%c0_34, %c0_35, %c0_36] : memref<4x8x1xf32, #tpu.memory_space<vmem>>, vector<4x8x1xf32>
    tpu.vector_store %arg10[%c0_34, %c0_35, %c0_36], %22 {strides = array<i32>} : memref<4x8x1xf32, #tpu.memory_space<vmem>>, vector<4x8x1xf32>,
    %c0_i32_37 = arith.constant 0 : i32
    %42 = arith.cmpi eq, %arg2, %c0_i32_37 : i32
    %43 = arith.extui %42 : i1 to i32
    %c0_i32_38 = arith.constant 0 : i32
    %44 = arith.cmpi ne, %43, %c0_i32_38 : i32
    scf.if %44 {
      %c0_39 = arith.constant 0 : index
      %c0_40 = arith.constant 0 : index
      %c0_41 = arith.constant 0 : index
      %45 = vector.load %arg11[%c0_39, %c0_40, %c0_41] : memref<4x8x1xf32, #tpu.memory_space<vmem>>, vector<4x8x1xf32>
      %46 = tpu.reciprocal %45 {approx = true} : vector<4x8x1xf32> -> vector<4x8x1xf32>
      %c0_42 = arith.constant 0 : index
      %c0_43 = arith.constant 0 : index
      %c0_44 = arith.constant 0 : index
      %47 = vector.load %arg12[%c0_42, %c0_43, %c0_44] : memref<4x8x8xf32, #tpu.memory_space<vmem>>, vector<4x8x8xf32>
      %48 = vector.broadcast %46 : vector<4x8x1xf32> to vector<4x8x8xf32>
      %49 = arith.mulf %47, %48 : vector<4x8x8xf32>
      %50 = vector.extract_strided_slice %49 {offsets = [0, 0, 0], sizes = [1, 8, 8], strides = [1, 1, 1]} : vector<4x8x8xf32> to vector<1x8x8xf32>
      %51 = vector.shape_cast %50 : vector<1x8x8xf32> to vector<8x8xf32>
      %c0_45 = arith.constant 0 : index
      %c0_46 = arith.constant 0 : index
      %52 = vector.load %arg13[%c0_45, %c0_46] : memref<8x32xf32, #tpu.memory_space<vmem>>, vector<8x8xf32>
      tpu.vector_store %arg13[%c0_45, %c0_46], %51 {strides = array<i32>} : memref<8x32xf32, #tpu.memory_space<vmem>>, vector<8x8xf32>,
      %53 = vector.extract_strided_slice %49 {offsets = [1, 0, 0], sizes = [1, 8, 8], strides = [1, 1, 1]} : vector<4x8x8xf32> to vector<1x8x8xf32>
      %54 = vector.shape_cast %53 : vector<1x8x8xf32> to vector<8x8xf32>
      %c0_47 = arith.constant 0 : index
      %c8 = arith.constant 8 : index
      %55 = vector.load %arg13[%c0_47, %c8] : memref<8x32xf32, #tpu.memory_space<vmem>>, vector<8x8xf32>
      tpu.vector_store %arg13[%c0_47, %c8], %54 {strides = array<i32>} : memref<8x32xf32, #tpu.memory_space<vmem>>, vector<8x8xf32>,
      %56 = vector.extract_strided_slice %49 {offsets = [2, 0, 0], sizes = [1, 8, 8], strides = [1, 1, 1]} : vector<4x8x8xf32> to vector<1x8x8xf32>
      %57 = vector.shape_cast %56 : vector<1x8x8xf32> to vector<8x8xf32>
      %c0_48 = arith.constant 0 : index
      %c16 = arith.constant 16 : index
      %58 = vector.load %arg13[%c0_48, %c16] : memref<8x32xf32, #tpu.memory_space<vmem>>, vector<8x8xf32>
      tpu.vector_store %arg13[%c0_48, %c16], %57 {strides = array<i32>} : memref<8x32xf32, #tpu.memory_space<vmem>>, vector<8x8xf32>,
      %59 = vector.extract_strided_slice %49 {offsets = [3, 0, 0], sizes = [1, 8, 8], strides = [1, 1, 1]} : vector<4x8x8xf32> to vector<1x8x8xf32>
      %60 = vector.shape_cast %59 : vector<1x8x8xf32> to vector<8x8xf32>
      %c0_49 = arith.constant 0 : index
      %c24 = arith.constant 24 : index
      %61 = vector.load %arg13[%c0_49, %c24] : memref<8x32xf32, #tpu.memory_space<vmem>>, vector<8x8xf32>
      tpu.vector_store %arg13[%c0_49, %c24], %60 {strides = array<i32>} : memref<8x32xf32, #tpu.memory_space<vmem>>, vector<8x8xf32>,
      %c0_50 = arith.constant 0 : index
      %c0_51 = arith.constant 0 : index
      %62 = vector.load %arg13[%c0_50, %c0_51] : memref<8x32xf32, #tpu.memory_space<vmem>>, vector<8x32xf32>
      %63 = arith.truncf %62 : vector<8x32xf32> to vector<8x32xbf16>
      %c0_52 = arith.constant 0 : index
      %c0_53 = arith.constant 0 : index
      %64 = vector.load %arg7[%c0_52, %c0_53] : memref<32x32xbf16, #tpu.memory_space<vmem>>, vector<32x32xbf16>
      %cst_54 = arith.constant dense<0.000000e+00> : vector<8x32xf32>
      %65 = tpu.matmul %63, %64, %cst_54 {dimension_numbers = #tpu.dot_dimension_numbers<[1], [0], [0], [1], [0, 0, 1, 1], [], []>} : vector<8x32xbf16>, vector<32x32xbf16>, vector<8x32xf32> -> vector<8x32xf32>
      %c0_55 = arith.constant 0 : index
      %c0_56 = arith.constant 0 : index
      %66 = vector.load %arg8[%c0_55, %c0_56] : memref<1x32xf32, #tpu.memory_space<vmem>>, vector<1x32xf32>
      %67 = vector.broadcast %66 : vector<1x32xf32> to vector<8x32xf32>
      %68 = arith.addf %65, %67 : vector<8x32xf32>
      %c0_57 = arith.constant 0 : index
      %c0_58 = arith.constant 0 : index
      %c0_59 = arith.constant 0 : index
      %69 = vector.load %arg9[%c0_57, %c0_58, %c0_59] : memref<1x8x32xf32, #tpu.memory_space<vmem>>, vector<1x8x32xf32>
      %70 = vector.shape_cast %69 : vector<1x8x32xf32> to vector<8x32xf32>
      %71 = vector.shape_cast %68 : vector<8x32xf32> to vector<1x8x32xf32>
      tpu.vector_store %arg9[%c0_57, %c0_58, %c0_59], %71 {strides = array<i32>} : memref<1x8x32xf32, #tpu.memory_space<vmem>>, vector<1x8x32xf32>,
    } else {
    }
    return
  }
  func.func @transform_0(%arg0: i32, %arg1: i32, %arg2: i32) -> (i32, i32, i32, i32) {
    %c0_i32 = arith.constant 0 : i32
    %c0_i32_0 = arith.constant 0 : i32
    %c0_i32_1 = arith.constant 0 : i32
    return %arg0, %c0_i32, %arg1, %c0_i32_0 : i32, i32, i32, i32
  }
  func.func @transform_1(%arg0: i32, %arg1: i32, %arg2: i32) -> (i32, i32, i32, i32) {
    %c0_i32 = arith.constant 0 : i32
    %c0_i32_0 = arith.constant 0 : i32
    %c0_i32_1 = arith.constant 0 : i32
    return %arg0, %c0_i32, %arg2, %c0_i32_0 : i32, i32, i32, i32
  }
  func.func @transform_2(%arg0: i32, %arg1: i32, %arg2: i32) -> (i32, i32, i32, i32) {
    %c0_i32 = arith.constant 0 : i32
    %c0_i32_0 = arith.constant 0 : i32
    %c0_i32_1 = arith.constant 0 : i32
    return %arg0, %c0_i32, %arg2, %c0_i32_0 : i32, i32, i32, i32
  }
  func.func @transform_3(%arg0: i32, %arg1: i32, %arg2: i32) -> (i32, i32, i32) {
    %c0_i32 = arith.constant 0 : i32
    return %arg0, %arg1, %arg2 : i32, i32, i32
  }
  func.func @transform_4(%arg0: i32, %arg1: i32, %arg2: i32) -> (i32, i32) {
    %c0_i32 = arith.constant 0 : i32
    %c0_i32_0 = arith.constant 0 : i32
    %c0_i32_1 = arith.constant 0 : i32
    return %c0_i32, %c0_i32_0 : i32, i32
  }
  func.func @transform_5(%arg0: i32, %arg1: i32, %arg2: i32) -> (i32, i32) {
    %c0_i32 = arith.constant 0 : i32
    %c0_i32_0 = arith.constant 0 : i32
    %c0_i32_1 = arith.constant 0 : i32
    return %c0_i32, %c0_i32_0 : i32, i32
  }
  func.func @transform_6(%arg0: i32, %arg1: i32, %arg2: i32) -> (i32, i32, i32) {
    %c0_i32 = arith.constant 0 : i32
    %c0_i32_0 = arith.constant 0 : i32
    return %arg0, %arg1, %c0_i32 : i32, i32, i32
  }
}

</mosaic_0001>

<llo_original>
// kernel: tpu_custom_call.1
$region0: #{tpu_custom_call.1}
  #allocation0 [shape = 'u32[]', space=smem, size = 0x4, offset = 0x4, fixed_abs, tag = 'smem constant byte address 0x4 - core index']
  #allocation1 [shape = 'u32[144,128]{1,0:T(1,128)}', space=vmem, size = 0x12000, scoped, tag = 'internal scratch']
  #allocation2 [shape = 'f32[4,8,1]{2,1,0:T(8,128)}', space=vmem, size = 0x4000, scoped, tag = 'scratch operand']
  #allocation3 [shape = 'f32[4,8,1]{2,1,0:T(8,128)}', space=vmem, size = 0x4000, scoped, tag = 'scratch operand']
  #allocation4 [shape = 'f32[4,8,8]{2,1,0:T(8,128)}', space=vmem, size = 0x4000, scoped, tag = 'scratch operand']
  #allocation5 [shape = 'f32[8,32]{1,0:T(8,128)}', space=vmem, size = 0x1000, scoped, tag = 'scratch operand']
  %s0 = inlined_call_operand.hbm [shape: bf16[2,4,8,8], index: 0, kind: input, shape index: {}]
  %s1 = inlined_call_operand.hbm [shape: bf16[2,4,8,8], index: 1, kind: input, shape index: {}]
  %s2 = inlined_call_operand.hbm [shape: bf16[2,4,8,8], index: 2, kind: input, shape index: {}]
  %s3 = inlined_call_operand.vmem [shape: s8[2,8,8], index: 3, kind: input, shape index: {}]
  %s4 = inlined_call_operand.hbm [shape: bf16[32,32], index: 4, kind: input, shape index: {}]
  %s5 = inlined_call_operand.vmem [shape: f32[1,32], index: 5, kind: input, shape index: {}]
  %s6 = inlined_call_operand.hbm [shape: f32[2,8,32], index: 6, kind: output, shape index: {}]
  %s7 = sld [smem:[#allocation0]]
  $region81: #{tpu_custom_call.1} parent=0
    _
  %s9 = ssub.s32 1, %s7
  %s10 = scalar_select 0, %s9, %s7
  $region1: #{tpu_custom_call.1} parent=0
    #allocation6 [shape = 'u8[16384]{0}', space=vmem, size = 0x4000, scoped, tag = 'input window, operand 0']
    #allocation7 [shape = 's32[2]{0}', space=sflag, size = 0x8, scoped, tag = 'scoped memory for tpu_custom_call.1']
    #allocation8 [shape = 's32[2]{0}', space=sflag, size = 0x8, scoped, tag = 'scoped memory for tpu_custom_call.1']
    #allocation9 [shape = 'u8[16384]{0}', space=vmem, size = 0x4000, scoped, tag = 'input window, operand 1']
    #allocation10 [shape = 's32[2]{0}', space=sflag, size = 0x8, scoped, tag = 'scoped memory for tpu_custom_call.1']
    #allocation11 [shape = 'u8[16384]{0}', space=vmem, size = 0x4000, scoped, tag = 'input window, operand 2']
    #allocation12 [shape = 'u8[8192]{0}', space=vmem, size = 0x2000, scoped, tag = 'input window, operand 4, single buffered']
    #allocation13 [shape = 's32[1]{0}', space=sflag, size = 0x4, scoped, tag = 'scoped memory for tpu_custom_call.1']
    #allocation14 [shape = 'u8[8192]{0}', space=vmem, size = 0x2000, scoped, tag = 'output window, operand 0']
    %11 = vsyncpa [#allocation7], 0
    %s12 = scalar_lea.sflag [#allocation7], 1
    %13 = vsyncpa %s12, 0
    %14 = vsyncpa [#allocation10], 0
    %s15 = scalar_lea.sflag [#allocation10], 1
    %16 = vsyncpa %s15, 0
    %17 = vsyncpa [#allocation13], 0
    %18 = vsyncpa [#allocation8], 0
    %s19 = scalar_lea.sflag [#allocation8], 1
    %20 = vsyncpa %s19, 0
    loop: start=0, step=1, limit=4
    $region2: #{tpu_custom_call.1} parent=1 // loop_pre_header
      _
    $region3: #{tpu_custom_call.1} parent=1 // loop_header
      %s22 = sphi 0, %s26
      %p23 = scmp.ge.s32.totalorder %s22, 4
      %s29 = sphi 0, %s48
      %s30 = sphi 0, %s44
      %s31 = sphi 0, %s40
      %s32 = sphi 0, %s29
      %s33 = sphi 0, %s30
      %s34 = sphi 0, %s31
      %s35 = sphi 0, %s32
      %s36 = sphi 0, %s33
      %s37 = sphi 0, %s34
      %s53 = sphi 0, %s55
      %s56 = sphi 0, %s53
      %s57 = sphi 0, %s56
      %s73 = sphi 0, %s57
      %s81 = sphi 0, %s83
      %s84 = sphi 0, %s81
      %s85 = sphi 0, %s84
      %s101 = sphi 0, %s85
      %s109 = sphi 0, %s111
      %s112 = sphi 0, %s109
      %s113 = sphi 0, %s112
      %s129 = sphi 0, %s113
      %s139 = sphi 0, %s141
      %s142 = sphi 0, %s139
      %s143 = sphi 0, %s142
      %s159 = sphi 0, %s143
      %s163 = sphi 0, %s163
      %s165 = sphi 0, %s163
      %s166 = sphi 0, %s165
      %s180 = sphi 0, %s166
      %s184 = sphi 0, %s184
      %s186 = sphi 0, %s184
      %s187 = sphi 0, %s186
      %s201 = sphi 0, %s187
      %s209 = sphi 0, %s211
      %s212 = sphi 0, %s209
      %s213 = sphi 0, %s212
      %s229 = sphi 0, %s213
    $region4: #{tpu_custom_call.1} parent=1 // loop_header_branch
      %25 = sbr.rel (%p23) target = $region8
    $region5: #{tpu_custom_call.1} parent=1 // loop_body
      %s27 = ssub.s32 %s22, 1
      %s28 = ssub.s32 %s22, 2
      %s38 = sadd.s32 1, %s31
      %p39 = scmp.ge.s32.totalorder %s38, 1
      %s40 = scalar_select %p39, 0, %s38
      %s41 = sadd.s32 1, %s30
      %s42 = scalar_select %p39, %s41, %s30
      %p43 = scmp.ge.s32.totalorder %s42, 1
      %s44 = scalar_select %p43, 0, %s42
      %s45 = sadd.s32 1, %s29
      %s46 = scalar_select %p43, %s45, %s29
      %p47 = scmp.ge.s32.totalorder %s46, 2
      %s48 = scalar_select %p47, 0, %s46
      %s49 = ssub.s32 %s29, %s48
      %s50 = ssub.s32 %s30, %s44
      %s51 = sor.u32 %s49, %s50
      %p52 = scmp.eq.s32.totalorder %s51, 0
      %s54 = sadd.s32 %s53, 1
      %s55 = scalar_select %p52, %s53, %s54
      %p58 = pneg %p52
      %p59 = scmp.eq.s32.totalorder %s22, 1
      %p60 = por %p58, %p59
      %p61 = scmp.ne.s32.totalorder %s53, %s56
      %p62 = scmp.eq.s32.totalorder %s22, 0
      %p63 = por %p61, %p62
      %p64 = scmp.ne.s32.totalorder %s53, %s56
      %p65 = scmp.eq.s32.totalorder %s27, 1
      %p66 = por %p64, %p65
      %p67 = scmp.ne.s32.totalorder %s56, %s57
      %p68 = scmp.eq.s32.totalorder %s27, 0
      %p69 = por %p67, %p68
      %p70 = scmp.ne.s32.totalorder %s56, %s57
      %p71 = scmp.eq.s32.totalorder %s28, 1
      %p72 = por %p70, %p71
      %p74 = scmp.ne.s32.totalorder %s57, %s73
      %p75 = scmp.eq.s32.totalorder %s28, 0
      %p76 = por %p74, %p75
      %s77 = ssub.s32 %s29, %s48
      %s78 = ssub.s32 %s31, %s40
      %s79 = sor.u32 %s77, %s78
      %p80 = scmp.eq.s32.totalorder %s79, 0
      %s82 = sadd.s32 %s81, 1
      %s83 = scalar_select %p80, %s81, %s82
      %p86 = pneg %p80
      %p87 = scmp.eq.s32.totalorder %s22, 1
      %p88 = por %p86, %p87
      %p89 = scmp.ne.s32.totalorder %s81, %s84
      %p90 = scmp.eq.s32.totalorder %s22, 0
      %p91 = por %p89, %p90
      %p92 = scmp.ne.s32.totalorder %s81, %s84
      %p93 = scmp.eq.s32.totalorder %s27, 1
      %p94 = por %p92, %p93
      %p95 = scmp.ne.s32.totalorder %s84, %s85
      %p96 = scmp.eq.s32.totalorder %s27, 0
      %p97 = por %p95, %p96
      %p98 = scmp.ne.s32.totalorder %s84, %s85
      %p99 = scmp.eq.s32.totalorder %s28, 1
      %p100 = por %p98, %p99
      %p102 = scmp.ne.s32.totalorder %s85, %s101
      %p103 = scmp.eq.s32.totalorder %s28, 0
      %p104 = por %p102, %p103
      %s105 = ssub.s32 %s29, %s48
      %s106 = ssub.s32 %s31, %s40
      %s107 = sor.u32 %s105, %s106
      %p108 = scmp.eq.s32.totalorder %s107, 0
      %s110 = sadd.s32 %s109, 1
      %s111 = scalar_select %p108, %s109, %s110
      %p114 = pneg %p108
      %p115 = scmp.eq.s32.totalorder %s22, 1
      %p116 = por %p114, %p115
      %p117 = scmp.ne.s32.totalorder %s109, %s112
      %p118 = scmp.eq.s32.totalorder %s22, 0
      %p119 = por %p117, %p118
      %p120 = scmp.ne.s32.totalorder %s109, %s112
      %p121 = scmp.eq.s32.totalorder %s27, 1
      %p122 = por %p120, %p121
      %p123 = scmp.ne.s32.totalorder %s112, %s113
      %p124 = scmp.eq.s32.totalorder %s27, 0
      %p125 = por %p123, %p124
      %p126 = scmp.ne.s32.totalorder %s112, %s113
      %p127 = scmp.eq.s32.totalorder %s28, 1
      %p128 = por %p126, %p127
      %p130 = scmp.ne.s32.totalorder %s113, %s129
      %p131 = scmp.eq.s32.totalorder %s28, 0
      %p132 = por %p130, %p131
      %s133 = ssub.s32 %s29, %s48
      %s134 = ssub.s32 %s30, %s44
      %s135 = sor.u32 %s133, %s134
      %s136 = ssub.s32 %s31, %s40
      %s137 = sor.u32 %s135, %s136
      %p138 = scmp.eq.s32.totalorder %s137, 0
      %s140 = sadd.s32 %s139, 1
      %s141 = scalar_select %p138, %s139, %s140
      %p144 = pneg %p138
      %p145 = scmp.eq.s32.totalorder %s22, 1
      %p146 = por %p144, %p145
      %p147 = scmp.ne.s32.totalorder %s139, %s142
      %p148 = scmp.eq.s32.totalorder %s22, 0
      %p149 = por %p147, %p148
      %p150 = scmp.ne.s32.totalorder %s139, %s142
      %p151 = scmp.eq.s32.totalorder %s27, 1
      %p152 = por %p150, %p151
      %p153 = scmp.ne.s32.totalorder %s142, %s143
      %p154 = scmp.eq.s32.totalorder %s27, 0
      %p155 = por %p153, %p154
      %p156 = scmp.ne.s32.totalorder %s142, %s143
      %p157 = scmp.eq.s32.totalorder %s28, 1
      %p158 = por %p156, %p157
      %p160 = scmp.ne.s32.totalorder %s143, %s159
      %p161 = scmp.eq.s32.totalorder %s28, 0
      %p162 = por %p160, %p161
      %s164 = sadd.s32 %s163, 1
      %p167 = scmp.eq.s32.totalorder %s22, 1
      %p168 = scmp.ne.s32.totalorder %s163, %s165
      %p169 = scmp.eq.s32.totalorder %s22, 0
      %p170 = por %p168, %p169
      %p171 = scmp.ne.s32.totalorder %s163, %s165
      %p172 = scmp.eq.s32.totalorder %s27, 1
      %p173 = por %p171, %p172
      %p174 = scmp.ne.s32.totalorder %s165, %s166
      %p175 = scmp.eq.s32.totalorder %s27, 0
      %p176 = por %p174, %p175
      %p177 = scmp.ne.s32.totalorder %s165, %s166
      %p178 = scmp.eq.s32.totalorder %s28, 1
      %p179 = por %p177, %p178
      %p181 = scmp.ne.s32.totalorder %s166, %s180
      %p182 = scmp.eq.s32.totalorder %s28, 0
      %p183 = por %p181, %p182
      %s185 = sadd.s32 %s184, 1
      %p188 = scmp.eq.s32.totalorder %s22, 1
      %p189 = scmp.ne.s32.totalorder %s184, %s186
      %p190 = scmp.eq.s32.totalorder %s22, 0
      %p191 = por %p189, %p190
      %p192 = scmp.ne.s32.totalorder %s184, %s186
      %p193 = scmp.eq.s32.totalorder %s27, 1
      %p194 = por %p192, %p193
      %p195 = scmp.ne.s32.totalorder %s186, %s187
      %p196 = scmp.eq.s32.totalorder %s27, 0
      %p197 = por %p195, %p196
      %p198 = scmp.ne.s32.totalorder %s186, %s187
      %p199 = scmp.eq.s32.totalorder %s28, 1
      %p200 = por %p198, %p199
      %p202 = scmp.ne.s32.totalorder %s187, %s201
      %p203 = scmp.eq.s32.totalorder %s28, 0
      %p204 = por %p202, %p203
      %s205 = ssub.s32 %s29, %s48
      %s206 = ssub.s32 %s30, %s44
      %s207 = sor.u32 %s205, %s206
      %p208 = scmp.eq.s32.totalorder %s207, 0
      %s210 = sadd.s32 %s209, 1
      %s211 = scalar_select %p208, %s209, %s210
      %p214 = pneg %p208
      %p215 = scmp.eq.s32.totalorder %s22, 1
      %p216 = por %p214, %p215
      %p217 = scmp.ne.s32.totalorder %s209, %s212
      %p218 = scmp.eq.s32.totalorder %s22, 0
      %p219 = por %p217, %p218
      %p220 = scmp.ne.s32.totalorder %s209, %s212
      %p221 = scmp.eq.s32.totalorder %s27, 1
      %p222 = por %p220, %p221
      %p223 = scmp.ne.s32.totalorder %s212, %s213
      %p224 = scmp.eq.s32.totalorder %s27, 0
      %p225 = por %p223, %p224
      %p226 = scmp.ne.s32.totalorder %s212, %s213
      %p227 = scmp.eq.s32.totalorder %s28, 1
      %p228 = por %p226, %p227
      %p230 = scmp.ne.s32.totalorder %s213, %s229
      %p231 = scmp.eq.s32.totalorder %s28, 0
      %p232 = por %p230, %p231
      %p233 = scmp.le.s32.totalorder 1, %s22
      %p234 = scmp.lt.s32.totalorder %s22, 3
      %p235 = pnand %p233, %p234
      %p236 = pneg %p235
      // Predicated region
      $region9: #{tpu_custom_call.1} parent=5 // pred_check
        _
      $region10: #{tpu_custom_call.1} parent=5 // pred_check_branch
        %238 = sbr.rel (%p235) target = $region12
      $region11: #{tpu_custom_call.1} parent=5 // pred_region
        %s239 = ssub.s32 %s22, 1
        // Predicated region
        $region13: #{tpu_custom_call.1} parent=11 // pred_check
          %p240 = pneg %p176
        $region14: #{tpu_custom_call.1} parent=11 // pred_check_branch
          %242 = sbr.rel (%p240) target = $region16
        $region15: #{tpu_custom_call.1} parent=11 // pred_region
          %s244 = ssub.s32 256, 256
          %245 = vsyncadd [#allocation13], %s244
          %s246 = sshll.u32 [#allocation12], 4
          %s247 = int_to_ptr.vmem [resolvable:$true] %s246
          %252 = dma.hbm_to_vmem [thread:$0]  %s4, 256, %s247, [#allocation13], 64, 64, 4
        $region16: #{tpu_custom_call.1} parent=11 // pred_fallthru
          _
        // Predicated region
        $region17: #{tpu_custom_call.1} parent=11 // pred_check
          %p253 = pneg %p197
        $region18: #{tpu_custom_call.1} parent=11 // pred_check_branch
          %255 = sbr.rel (%p253) target = $region20
        $region19: #{tpu_custom_call.1} parent=11 // pred_region
          _
        $region20: #{tpu_custom_call.1} parent=11 // pred_fallthru
          _
      $region12: #{tpu_custom_call.1} parent=5 // pred_fallthru
        _
      %p256 = scmp.lt.s32.totalorder %s22, 2
      // Predicated region
      $region21: #{tpu_custom_call.1} parent=5 // pred_check
        %p257 = pneg %p256
      $region22: #{tpu_custom_call.1} parent=5 // pred_check_branch
        %259 = sbr.rel (%p257) target = $region24
      $region23: #{tpu_custom_call.1} parent=5 // pred_region
        // Predicated region
        $region25: #{tpu_custom_call.1} parent=23 // pred_check
          %p260 = pneg %p63
        $region26: #{tpu_custom_call.1} parent=23 // pred_check_branch
          %262 = sbr.rel (%p260) target = $region28
        $region27: #{tpu_custom_call.1} parent=23 // pred_region
          %s263 = sand.u32 %s53, 1
          %s264 = scalar_lea.sflag [#allocation7], %s263
          %s265 = sand.u32 %s53, 1
          %s266 = smul.addr %s265, 16
          %s267 = scalar_lea.vmem [#allocation6], %s266
          %s269 = ssub.s32 256, 256
          %270 = vsyncadd %s264, %s269
          %s271 = smul.addr %s29, 4
          %s272 = sadd.s32 %s30, %s271
          %s273 = smul.addr %s272, 64
          %s274 = scalar_lea.hbm %s0, %s273
          %s275 = sshll.u32 %s267, 4
          %s276 = int_to_ptr.vmem [resolvable:$true] %s275
          %281 = dma.hbm_to_vmem [thread:$0]  %s274, 256, %s276, %s264, 64, 64, 4
        $region28: #{tpu_custom_call.1} parent=23 // pred_fallthru
          _
        // Predicated region
        $region29: #{tpu_custom_call.1} parent=23 // pred_check
          %p282 = pneg %p91
        $region30: #{tpu_custom_call.1} parent=23 // pred_check_branch
          %284 = sbr.rel (%p282) target = $region32
        $region31: #{tpu_custom_call.1} parent=23 // pred_region
          %s285 = sand.u32 %s22, 1
          %s286 = scalar_lea.sflag [#allocation10], %s285
          %s287 = sand.u32 %s81, 1
          %s288 = smul.addr %s287, 16
          %s289 = scalar_lea.vmem [#allocation9], %s288
          %s291 = ssub.s32 256, 256
          %292 = vsyncadd %s286, %s291
          %s293 = smul.addr %s29, 4
          %s294 = sadd.s32 %s31, %s293
          %s295 = smul.addr %s294, 64
          %s296 = scalar_lea.hbm %s1, %s295
          %s297 = sshll.u32 %s289, 4
          %s298 = int_to_ptr.vmem [resolvable:$true] %s297
          %303 = dma.hbm_to_vmem [thread:$0]  %s296, 256, %s298, %s286, 64, 64, 4
        $region32: #{tpu_custom_call.1} parent=23 // pred_fallthru
          _
        // Predicated region
        $region33: #{tpu_custom_call.1} parent=23 // pred_check
          %p304 = pneg %p119
        $region34: #{tpu_custom_call.1} parent=23 // pred_check_branch
          %306 = sbr.rel (%p304) target = $region36
        $region35: #{tpu_custom_call.1} parent=23 // pred_region
          %s307 = sand.u32 %s22, 1
          %s308 = scalar_lea.sflag [#allocation10], %s307
          %s309 = sand.u32 %s109, 1
          %s310 = smul.addr %s309, 16
          %s311 = scalar_lea.vmem [#allocation11], %s310
          %s313 = ssub.s32 256, 256
          %314 = vsyncadd %s308, %s313
          %s315 = smul.addr %s29, 4
          %s316 = sadd.s32 %s31, %s315
          %s317 = smul.addr %s316, 64
          %s318 = scalar_lea.hbm %s2, %s317
          %s319 = sshll.u32 %s311, 4
          %s320 = int_to_ptr.vmem [resolvable:$true] %s319
          %325 = dma.hbm_to_vmem [thread:$0]  %s318, 256, %s320, %s308, 64, 64, 4
        $region36: #{tpu_custom_call.1} parent=23 // pred_fallthru
          _
        // Predicated region
        $region37: #{tpu_custom_call.1} parent=23 // pred_check
          %p326 = pneg %p149
        $region38: #{tpu_custom_call.1} parent=23 // pred_check_branch
          %328 = sbr.rel (%p326) target = $region40
        $region39: #{tpu_custom_call.1} parent=23 // pred_region
          %p329 = scmp.lt.s32.totalorder %s29, 1
          %s330 = scalar_select %p329, %s29, 1
          %p331 = scmp.lt.s32.totalorder %s30, 0
          %s332 = scalar_select %p331, %s30, 0
          %p333 = scmp.lt.s32.totalorder %s31, 0
          %s334 = scalar_select %p333, %s31, 0
          %s335 = sadd.s32 %s334, %s332
          %s336 = sadd.s32 %s335, %s330
          %s337 = smul.addr %s336, 2
          %s338 = scalar_lea.vmem %s3, %s337
        $region40: #{tpu_custom_call.1} parent=23 // pred_fallthru
          _
      $region24: #{tpu_custom_call.1} parent=5 // pred_fallthru
        _
      %p339 = scmp.le.s32.totalorder 1, %s22
      %p340 = scmp.lt.s32.totalorder %s22, 3
      %p341 = pnand %p339, %p340
      %p342 = pneg %p341
      // Predicated region
      $region41: #{tpu_custom_call.1} parent=5 // pred_check
        _
      $region42: #{tpu_custom_call.1} parent=5 // pred_check_branch
        %344 = sbr.rel (%p341) target = $region44
      $region43: #{tpu_custom_call.1} parent=5 // pred_region
        %s345 = ssub.s32 %s22, 1
        %s346 = sand.u32 %s56, 1
        %s347 = scalar_lea.sflag [#allocation7], %s346
        %s348 = sand.u32 %s56, 1
        %s349 = smul.addr %s348, 16
        %s350 = scalar_lea.vmem [#allocation6], %s349
        // Predicated region
        $region45: #{tpu_custom_call.1} parent=43 // pred_check
          %p351 = pneg %p69
        $region46: #{tpu_custom_call.1} parent=43 // pred_check_branch
          %353 = sbr.rel (%p351) target = $region48
        $region47: #{tpu_custom_call.1} parent=43 // pred_region
          %354 = dma.done %s347, 256
        $region48: #{tpu_custom_call.1} parent=43 // pred_fallthru
          _
        %s355 = sand.u32 %s27, 1
        %s356 = scalar_lea.sflag [#allocation10], %s355
        %s357 = sand.u32 %s84, 1
        %s358 = smul.addr %s357, 16
        %s359 = scalar_lea.vmem [#allocation9], %s358
        // Predicated region
        $region49: #{tpu_custom_call.1} parent=43 // pred_check
          %p360 = pneg %p97
        $region50: #{tpu_custom_call.1} parent=43 // pred_check_branch
          %362 = sbr.rel (%p360) target = $region52
        $region51: #{tpu_custom_call.1} parent=43 // pred_region
          %363 = dma.done %s356, 256
        $region52: #{tpu_custom_call.1} parent=43 // pred_fallthru
          _
        %s364 = sand.u32 %s27, 1
        %s365 = scalar_lea.sflag [#allocation10], %s364
        %s366 = sand.u32 %s112, 1
        %s367 = smul.addr %s366, 16
        %s368 = scalar_lea.vmem [#allocation11], %s367
        // Predicated region
        $region53: #{tpu_custom_call.1} parent=43 // pred_check
          %p369 = pneg %p125
        $region54: #{tpu_custom_call.1} parent=43 // pred_check_branch
          %371 = sbr.rel (%p369) target = $region56
        $region55: #{tpu_custom_call.1} parent=43 // pred_region
          %372 = dma.done %s365, 256
        $region56: #{tpu_custom_call.1} parent=43 // pred_fallthru
          _
        // Predicated region
        $region57: #{tpu_custom_call.1} parent=43 // pred_check
          %p373 = pneg %p176
        $region58: #{tpu_custom_call.1} parent=43 // pred_check_branch
          %375 = sbr.rel (%p373) target = $region60
        $region59: #{tpu_custom_call.1} parent=43 // pred_region
          %376 = dma.done [#allocation13], 256
        $region60: #{tpu_custom_call.1} parent=43 // pred_fallthru
          _
        %s377 = sand.u32 %s56, 1
        %s378 = scalar_lea.sflag [#allocation7], %s377
        %s379 = sand.u32 %s56, 1
        %s380 = smul.addr %s379, 16
        %s381 = scalar_lea.vmem [#allocation6], %s380
        %p382 = pneg %p69
        %p383 = pneg %p66
        %s384 = sand.u32 %s27, 1
        %s385 = scalar_lea.sflag [#allocation10], %s384
        %s386 = sand.u32 %s84, 1
        %s387 = smul.addr %s386, 16
        %s388 = scalar_lea.vmem [#allocation9], %s387
        %p389 = pneg %p97
        %p390 = pneg %p94
        %s391 = sand.u32 %s27, 1
        %s392 = scalar_lea.sflag [#allocation10], %s391
        %s393 = sand.u32 %s112, 1
        %s394 = smul.addr %s393, 16
        %s395 = scalar_lea.vmem [#allocation11], %s394
        %p396 = pneg %p125
        %p397 = pneg %p122
        %p398 = scmp.lt.s32.totalorder %s32, 1
        %s399 = scalar_select %p398, %s32, 1
        %p400 = scmp.lt.s32.totalorder %s33, 0
        %s401 = scalar_select %p400, %s33, 0
        %p402 = scmp.lt.s32.totalorder %s34, 0
        %s403 = scalar_select %p402, %s34, 0
        %s404 = sadd.s32 %s403, %s401
        %s405 = sadd.s32 %s404, %s399
        %s406 = smul.addr %s405, 2
        %s407 = scalar_lea.vmem %s3, %s406
        %p408 = pneg %p155
        %p409 = pneg %p152
        %p410 = pneg %p176
        %p411 = pneg %p173
        %p412 = pneg %p197
        %p413 = pneg %p194
        %p414 = pneg %p225
        %p415 = pneg %p222
        %s416 = sand.u32 %s212, 1
        %s417 = scalar_lea.sflag [#allocation8], %s416
        %s418 = sand.u32 %s212, 1
        %s419 = smul.addr %s418, 8
        %s420 = scalar_lea.vmem [#allocation14], %s419
        %p421 = scmp.lt.s32.totalorder %s32, 1
        %s422 = scalar_select %p421, %s32, 1
        %p423 = scmp.lt.s32.totalorder %s33, 0
        %s424 = scalar_select %p423, %s33, 0
        %p425 = scmp.lt.s32.totalorder %s34, 0
        %s426 = scalar_select %p425, %s34, 0
        %s427 = sadd.s32 %s426, %s424
        %s428 = sadd.s32 %s427, %s422
        %s429 = smul.addr %s428, 2
        %s430 = scalar_lea.vmem %s3, %s429
        %p434 = scmp.eq.s32.totalorder %s34, 0
        // Predicated region
        $region61: #{tpu_custom_call.1} parent=43 // pred_check
          %p435 = pneg %p434
        $region62: #{tpu_custom_call.1} parent=43 // pred_check_branch
          %437 = sbr.rel (%p435) target = $region64
        $region63: #{tpu_custom_call.1} parent=43 // pred_region
          %vm438 = vcmask 7168
          %439 = vst.msk [vmem:[#allocation2] sm:$0xff] %vm438, -inf
          %440 = vst.msk [vmem:[#allocation2 + $0x8] sm:$0xff] %vm438, -inf
          %441 = vst.msk [vmem:[#allocation2 + $0x10] sm:$0xff] %vm438, -inf
          %442 = vst.msk [vmem:[#allocation2 + $0x18] sm:$0xff] %vm438, -inf
          %443 = vst.msk [vmem:[#allocation3] sm:$0xff] %vm438, 0.0
          %444 = vst.msk [vmem:[#allocation3 + $0x8] sm:$0xff] %vm438, 0.0
          %445 = vst.msk [vmem:[#allocation3 + $0x10] sm:$0xff] %vm438, 0.0
          %446 = vst.msk [vmem:[#allocation3 + $0x18] sm:$0xff] %vm438, 0.0
          %vm447 = vcmask 64512
          %448 = vst.msk [vmem:[#allocation4] sm:$0xff] %vm447, 0.0
          %449 = vst.msk [vmem:[#allocation4 + $0x8] sm:$0xff] %vm447, 0.0
          %450 = vst.msk [vmem:[#allocation4 + $0x10] sm:$0xff] %vm447, 0.0
          %451 = vst.msk [vmem:[#allocation4 + $0x18] sm:$0xff] %vm447, 0.0
        $region64: #{tpu_custom_call.1} parent=43 // pred_fallthru
          _
        %v452 = vld [vmem:[%s350] sm:$0xf]
        %v453 = vld [vmem:[%s350 + $0x4] sm:$0xf]
        %v454 = vld [vmem:[%s350 + $0x8] sm:$0xf]
        %v455 = vld [vmem:[%s350 + $0xc] sm:$0xf]
        %v456 = vld [vmem:[%s359] sm:$0xf]
        %v457 = vld [vmem:[%s359 + $0x4] sm:$0xf]
        %v458 = vld [vmem:[%s359 + $0x8] sm:$0xf]
        %v459 = vld [vmem:[%s359 + $0xc] sm:$0xf]
        %v460 = vld [vmem:[%s368] sm:$0xf]
        %v461 = vld [vmem:[%s368 + $0x4] sm:$0xf]
        %v462 = vld [vmem:[%s368 + $0x8] sm:$0xf]
        %v463 = vld [vmem:[%s368 + $0xc] sm:$0xf]
        %vm464 = vcmask 64512
        %v466 = vsel %vm464, %v452, 0
        %v469 = vsel %vm464, %v456, 0
        %471 = vmatprep.subr.bf16.mxu0 0
        %472 = vmatpush1.bf16.xpose.msra.mxu0 %v469
        %473 = vmatprep.subr.bf16.mxu0 0
        %474 = vmatpush1.bf16.xpose.msra.mxu0 0
        %475 = vmatprep.subr.bf16.mxu0 0
        %476 = vmatpush1.bf16.xpose.msra.mxu0 0
        %477 = vmatprep.subr.bf16.mxu0 0
        %478 = vmatpush1.bf16.xpose.msra.mxu0 0
        %479 = vmatprep.subr.bf16.mxu0 0
        %480 = vmatpush1.bf16.xpose.msra.mxu0 0
        %481 = vmatprep.subr.bf16.mxu0 0
        %482 = vmatpush1.bf16.xpose.msra.mxu0 0
        %483 = vmatprep.subr.bf16.mxu0 0
        %484 = vmatpush1.bf16.xpose.msra.mxu0 0
        %485 = vmatprep.subr.bf16.mxu0 0
        %486 = vmatpush1.bf16.xpose.msra.mxu0 0
        %487 = vmatprep.subr.bf16.mxu0 0
        %488 = vmatpush1.bf16.xpose.msra.mxu0 0
        %489 = vmatprep.subr.bf16.mxu0 0
        %490 = vmatpush1.bf16.xpose.msra.mxu0 0
        %491 = vmatprep.subr.bf16.mxu0 0
        %492 = vmatpush1.bf16.xpose.msra.mxu0 0
        %493 = vmatprep.subr.bf16.mxu0 0
        %494 = vmatpush1.bf16.xpose.msra.mxu0 0
        %495 = vmatprep.subr.bf16.mxu0 0
        %496 = vmatpush1.bf16.xpose.msra.mxu0 0
        %497 = vmatprep.subr.bf16.mxu0 0
        %498 = vmatpush1.bf16.xpose.msra.mxu0 0
        %499 = vmatprep.subr.bf16.mxu0 0
        %500 = vmatpush1.bf16.xpose.msra.mxu0 0
        %501 = vmatprep.subr.bf16.mxu0 0
        %502 = vmatpush1.bf16.xpose.msra.mxu0 0
        %503 = vmatprep.mubr.bf16.mxu0 0
        %504 = vmatmul.mubr.bf16.gmra.mrb[0].mxu0 %v466
        %v505 = vpop.f32.mrb[0].mxu0
        %v506 = vadd.f32 0.0, %v505
        %v507 = vpop.f32.mrb[0].mxu0
        %v508 = vpop.f32.mrb[0].mxu0
        %v509 = vpop.f32.mrb[0].mxu0
        %510 = vdwg.mxu0
        %v512 = vsel %vm464, %v453, 0
        %v515 = vsel %vm464, %v457, 0
        %517 = vmatprep.subr.bf16.mxu0 0
        %518 = vmatpush1.bf16.xpose.msra.mxu0 %v515
        %519 = vmatprep.subr.bf16.mxu0 0
        %520 = vmatpush1.bf16.xpose.msra.mxu0 0
        %521 = vmatprep.subr.bf16.mxu0 0
        %522 = vmatpush1.bf16.xpose.msra.mxu0 0
        %523 = vmatprep.subr.bf16.mxu0 0
        %524 = vmatpush1.bf16.xpose.msra.mxu0 0
        %525 = vmatprep.subr.bf16.mxu0 0
        %526 = vmatpush1.bf16.xpose.msra.mxu0 0
        %527 = vmatprep.subr.bf16.mxu0 0
        %528 = vmatpush1.bf16.xpose.msra.mxu0 0
        %529 = vmatprep.subr.bf16.mxu0 0
        %530 = vmatpush1.bf16.xpose.msra.mxu0 0
        %531 = vmatprep.subr.bf16.mxu0 0
        %532 = vmatpush1.bf16.xpose.msra.mxu0 0
        %533 = vmatprep.subr.bf16.mxu0 0
        %534 = vmatpush1.bf16.xpose.msra.mxu0 0
        %535 = vmatprep.subr.bf16.mxu0 0
        %536 = vmatpush1.bf16.xpose.msra.mxu0 0
        %537 = vmatprep.subr.bf16.mxu0 0
        %538 = vmatpush1.bf16.xpose.msra.mxu0 0
        %539 = vmatprep.subr.bf16.mxu0 0
        %540 = vmatpush1.bf16.xpose.msra.mxu0 0
        %541 = vmatprep.subr.bf16.mxu0 0
        %542 = vmatpush1.bf16.xpose.msra.mxu0 0
        %543 = vmatprep.subr.bf16.mxu0 0
        %544 = vmatpush1.bf16.xpose.msra.mxu0 0
        %545 = vmatprep.subr.bf16.mxu0 0
        %546 = vmatpush1.bf16.xpose.msra.mxu0 0
        %547 = vmatprep.subr.bf16.mxu0 0
        %548 = vmatpush1.bf16.xpose.msra.mxu0 0
        %549 = vmatprep.mubr.bf16.mxu0 0
        %550 = vmatmul.mubr.bf16.gmra.mrb[0].mxu0 %v512
        %v551 = vpop.f32.mrb[0].mxu0
        %v552 = vadd.f32 0.0, %v551
        %v553 = vpop.f32.mrb[0].mxu0
        %v554 = vpop.f32.mrb[0].mxu0
        %v555 = vpop.f32.mrb[0].mxu0
        %556 = vdwg.mxu0
        %v558 = vsel %vm464, %v454, 0
        %v561 = vsel %vm464, %v458, 0
        %563 = vmatprep.subr.bf16.mxu0 0
        %564 = vmatpush1.bf16.xpose.msra.mxu0 %v561
        %565 = vmatprep.subr.bf16.mxu0 0
        %566 = vmatpush1.bf16.xpose.msra.mxu0 0
        %567 = vmatprep.subr.bf16.mxu0 0
        %568 = vmatpush1.bf16.xpose.msra.mxu0 0
        %569 = vmatprep.subr.bf16.mxu0 0
        %570 = vmatpush1.bf16.xpose.msra.mxu0 0
        %571 = vmatprep.subr.bf16.mxu0 0
        %572 = vmatpush1.bf16.xpose.msra.mxu0 0
        %573 = vmatprep.subr.bf16.mxu0 0
        %574 = vmatpush1.bf16.xpose.msra.mxu0 0
        %575 = vmatprep.subr.bf16.mxu0 0
        %576 = vmatpush1.bf16.xpose.msra.mxu0 0
        %577 = vmatprep.subr.bf16.mxu0 0
        %578 = vmatpush1.bf16.xpose.msra.mxu0 0
        %579 = vmatprep.subr.bf16.mxu0 0
        %580 = vmatpush1.bf16.xpose.msra.mxu0 0
        %581 = vmatprep.subr.bf16.mxu0 0
        %582 = vmatpush1.bf16.xpose.msra.mxu0 0
        %583 = vmatprep.subr.bf16.mxu0 0
        %584 = vmatpush1.bf16.xpose.msra.mxu0 0
        %585 = vmatprep.subr.bf16.mxu0 0
        %586 = vmatpush1.bf16.xpose.msra.mxu0 0
        %587 = vmatprep.subr.bf16.mxu0 0
        %588 = vmatpush1.bf16.xpose.msra.mxu0 0
        %589 = vmatprep.subr.bf16.mxu0 0
        %590 = vmatpush1.bf16.xpose.msra.mxu0 0
        %591 = vmatprep.subr.bf16.mxu0 0
        %592 = vmatpush1.bf16.xpose.msra.mxu0 0
        %593 = vmatprep.subr.bf16.mxu0 0
        %594 = vmatpush1.bf16.xpose.msra.mxu0 0
        %595 = vmatprep.mubr.bf16.mxu0 0
        %596 = vmatmul.mubr.bf16.gmra.mrb[0].mxu0 %v558
        %v597 = vpop.f32.mrb[0].mxu0
        %v598 = vadd.f32 0.0, %v597
        %v599 = vpop.f32.mrb[0].mxu0
        %v600 = vpop.f32.mrb[0].mxu0
        %v601 = vpop.f32.mrb[0].mxu0
        %602 = vdwg.mxu0
        %v604 = vsel %vm464, %v455, 0
        %v607 = vsel %vm464, %v459, 0
        %609 = vmatprep.subr.bf16.mxu0 0
        %610 = vmatpush1.bf16.xpose.msra.mxu0 %v607
        %611 = vmatprep.subr.bf16.mxu0 0
        %612 = vmatpush1.bf16.xpose.msra.mxu0 0
        %613 = vmatprep.subr.bf16.mxu0 0
        %614 = vmatpush1.bf16.xpose.msra.mxu0 0
        %615 = vmatprep.subr.bf16.mxu0 0
        %616 = vmatpush1.bf16.xpose.msra.mxu0 0
        %617 = vmatprep.subr.bf16.mxu0 0
        %618 = vmatpush1.bf16.xpose.msra.mxu0 0
        %619 = vmatprep.subr.bf16.mxu0 0
        %620 = vmatpush1.bf16.xpose.msra.mxu0 0
        %621 = vmatprep.subr.bf16.mxu0 0
        %622 = vmatpush1.bf16.xpose.msra.mxu0 0
        %623 = vmatprep.subr.bf16.mxu0 0
        %624 = vmatpush1.bf16.xpose.msra.mxu0 0
        %625 = vmatprep.subr.bf16.mxu0 0
        %626 = vmatpush1.bf16.xpose.msra.mxu0 0
        %627 = vmatprep.subr.bf16.mxu0 0
        %628 = vmatpush1.bf16.xpose.msra.mxu0 0
        %629 = vmatprep.subr.bf16.mxu0 0
        %630 = vmatpush1.bf16.xpose.msra.mxu0 0
        %631 = vmatprep.subr.bf16.mxu0 0
        %632 = vmatpush1.bf16.xpose.msra.mxu0 0
        %633 = vmatprep.subr.bf16.mxu0 0
        %634 = vmatpush1.bf16.xpose.msra.mxu0 0
        %635 = vmatprep.subr.bf16.mxu0 0
        %636 = vmatpush1.bf16.xpose.msra.mxu0 0
        %637 = vmatprep.subr.bf16.mxu0 0
        %638 = vmatpush1.bf16.xpose.msra.mxu0 0
        %639 = vmatprep.subr.bf16.mxu0 0
        %640 = vmatpush1.bf16.xpose.msra.mxu0 0
        %641 = vmatprep.mubr.bf16.mxu0 0
        %642 = vmatmul.mubr.bf16.gmra.mrb[0].mxu0 %v604
        %v643 = vpop.f32.mrb[0].mxu0
        %v644 = vadd.f32 0.0, %v643
        %v645 = vpop.f32.mrb[0].mxu0
        %v646 = vpop.f32.mrb[0].mxu0
        %v647 = vpop.f32.mrb[0].mxu0
        %648 = vdwg.mxu0
        %v649 = vld [vmem:[%s430] sm:$0x3]
        %vm650 = vnez %v649
        %v651 = vsel %vm650, 16843009, 0
        %v652 = vunpack.c.0.s8 %v651
        %vm653 = vcmp.ne.s32.totalorder %v652, 0
        %v654 = vsel %vm653, 1, 0
        %vm655 = vcmp.eq.s32.totalorder %v654, 1
        %v656 = vsel %vm655, %v506, -1e+09
        %v657 = vsel %vm655, %v552, -1e+09
        %v658 = vsel %vm655, %v598, -1e+09
        %v659 = vsel %vm655, %v644, -1e+09
        %v660 = vld [vmem:[#allocation2] sm:$0xff]
        %v661 = vld [vmem:[#allocation2 + $0x8] sm:$0xff]
        %v662 = vld [vmem:[#allocation2 + $0x10] sm:$0xff]
        %v663 = vld [vmem:[#allocation2 + $0x18] sm:$0xff]
        %v664 = vsel %vm464, %v656, -inf
        %665 = vmax.xlane.f32.xlu0 %v664
        %v666 = vpop.xlane.xlu0 %665
        %v667 = vsel %vm464, %v657, -inf
        %668 = vmax.xlane.f32.xlu0 %v667
        %v669 = vpop.xlane.xlu0 %668
        %v670 = vsel %vm464, %v658, -inf
        %671 = vmax.xlane.f32.xlu0 %v670
        %v672 = vpop.xlane.xlu0 %671
        %v673 = vsel %vm464, %v659, -inf
        %674 = vmax.xlane.f32.xlu0 %v673
        %v675 = vpop.xlane.xlu0 %674
        %v676 = vmax.f32 %v660, %v666
        %v677 = vmax.f32 %v661, %v669
        %v678 = vmax.f32 %v662, %v672
        %v679 = vmax.f32 %v663, %v675
        %v680 = vsub.f32 %v660, %v676
        %v681 = vsub.f32 %v661, %v677
        %v682 = vsub.f32 %v662, %v678
        %v683 = vsub.f32 %v663, %v679
        %v684 = vmul.f32 %v680, 1.442695
        %v685 = vpow.pop %v684
        %v686 = vmul.f32 %v681, 1.442695
        %v687 = vpow.pop %v686
        %v688 = vmul.f32 %v682, 1.442695
        %v689 = vpow.pop %v688
        %v690 = vmul.f32 %v683, 1.442695
        %v691 = vpow.pop %v690
        %693 = vset.pattern.permute.xlu0 0
        %694 = vperm.xlu0 %693, %v676
        %v695 = vpop.permute.xlu0 %694
        %698 = vset.pattern.permute.xlu0 0
        %699 = vperm.xlu0 %698, %v677
        %v700 = vpop.permute.xlu0 %699
        %703 = vset.pattern.permute.xlu0 0
        %704 = vperm.xlu0 %703, %v678
        %v705 = vpop.permute.xlu0 %704
        %708 = vset.pattern.permute.xlu0 0
        %709 = vperm.xlu0 %708, %v679
        %v710 = vpop.permute.xlu0 %709
        %v712 = vsub.f32 %v656, %v695
        %v713 = vsub.f32 %v657, %v700
        %v714 = vsub.f32 %v658, %v705
        %v715 = vsub.f32 %v659, %v710
        %v716 = vmul.f32 %v712, 1.442695
        %v717 = vpow.pop %v716
        %v718 = vmul.f32 %v713, 1.442695
        %v719 = vpow.pop %v718
        %v720 = vmul.f32 %v714, 1.442695
        %v721 = vpow.pop %v720
        %v722 = vmul.f32 %v715, 1.442695
        %v723 = vpow.pop %v722
        %v724 = vld [vmem:[#allocation3] sm:$0xff]
        %v725 = vld [vmem:[#allocation3 + $0x8] sm:$0xff]
        %v726 = vld [vmem:[#allocation3 + $0x10] sm:$0xff]
        %v727 = vld [vmem:[#allocation3 + $0x18] sm:$0xff]
        %v728 = vmul.f32 %v685, %v724
        %v729 = vmul.f32 %v687, %v725
        %v730 = vmul.f32 %v689, %v726
        %v731 = vmul.f32 %v691, %v727
        %v732 = vsel %vm464, %v717, 0.0
        %733 = vadd.xlane.f32.xlu0 %v732
        %v734 = vpop.xlane.xlu0 %733
        %v735 = vsel %vm464, %v719, 0.0
        %736 = vadd.xlane.f32.xlu0 %v735
        %v737 = vpop.xlane.xlu0 %736
        %v738 = vsel %vm464, %v721, 0.0
        %739 = vadd.xlane.f32.xlu0 %v738
        %v740 = vpop.xlane.xlu0 %739
        %v741 = vsel %vm464, %v723, 0.0
        %742 = vadd.xlane.f32.xlu0 %v741
        %v743 = vpop.xlane.xlu0 %742
        %v744 = vadd.f32 %v728, %v734
        %v745 = vadd.f32 %v729, %v737
        %v746 = vadd.f32 %v730, %v740
        %v747 = vadd.f32 %v731, %v743
        %vm748 = vcmask 7168
        %749 = vst.msk [vmem:[#allocation3] sm:$0xff] %vm748, %v744
        %750 = vst.msk [vmem:[#allocation3 + $0x8] sm:$0xff] %vm748, %v745
        %751 = vst.msk [vmem:[#allocation3 + $0x10] sm:$0xff] %vm748, %v746
        %752 = vst.msk [vmem:[#allocation3 + $0x18] sm:$0xff] %vm748, %v747
        %v753 = vld [vmem:[#allocation4] sm:$0xff]
        %v754 = vld [vmem:[#allocation4 + $0x8] sm:$0xff]
        %v755 = vld [vmem:[#allocation4 + $0x10] sm:$0xff]
        %v756 = vld [vmem:[#allocation4 + $0x18] sm:$0xff]
        %758 = vset.pattern.permute.xlu0 0
        %759 = vperm.xlu0 %758, %v685
        %v760 = vpop.permute.xlu0 %759
        %763 = vset.pattern.permute.xlu0 0
        %764 = vperm.xlu0 %763, %v687
        %v765 = vpop.permute.xlu0 %764
        %768 = vset.pattern.permute.xlu0 0
        %769 = vperm.xlu0 %768, %v689
        %v770 = vpop.permute.xlu0 %769
        %773 = vset.pattern.permute.xlu0 0
        %774 = vperm.xlu0 %773, %v691
        %v775 = vpop.permute.xlu0 %774
        %v777 = vmul.f32 %v760, %v753
        %v778 = vmul.f32 %v765, %v754
        %v779 = vmul.f32 %v770, %v755
        %v780 = vmul.f32 %v775, %v756
        %v781 = vpack.c.bf16 %v717, %v717
        %v782 = vpack.c.bf16 %v719, %v719
        %v783 = vpack.c.bf16 %v721, %v721
        %v784 = vpack.c.bf16 %v723, %v723
        %v786 = vsel %vm464, %v781, 0
        %vm788 = vcmask 1043456
        %v790 = vsel %vm788, %v460, 0
        %792 = vmatprep.subr.bf16.mxu0 0
        %793 = vmatpush1.bf16.msra.mxu0 %v790
        %794 = vmatprep.subr.bf16.mxu0 0
        %795 = vmatpush1.bf16.msra.mxu0 0
        %796 = vmatprep.subr.bf16.mxu0 0
        %797 = vmatpush1.bf16.msra.mxu0 0
        %798 = vmatprep.subr.bf16.mxu0 0
        %799 = vmatpush1.bf16.msra.mxu0 0
        %800 = vmatprep.subr.bf16.mxu0 0
        %801 = vmatpush1.bf16.msra.mxu0 0
        %802 = vmatprep.subr.bf16.mxu0 0
        %803 = vmatpush1.bf16.msra.mxu0 0
        %804 = vmatprep.subr.bf16.mxu0 0
        %805 = vmatpush1.bf16.msra.mxu0 0
        %806 = vmatprep.subr.bf16.mxu0 0
        %807 = vmatpush1.bf16.msra.mxu0 0
        %808 = vmatprep.subr.bf16.mxu0 0
        %809 = vmatpush1.bf16.msra.mxu0 0
        %810 = vmatprep.subr.bf16.mxu0 0
        %811 = vmatpush1.bf16.msra.mxu0 0
        %812 = vmatprep.subr.bf16.mxu0 0
        %813 = vmatpush1.bf16.msra.mxu0 0
        %814 = vmatprep.subr.bf16.mxu0 0
        %815 = vmatpush1.bf16.msra.mxu0 0
        %816 = vmatprep.subr.bf16.mxu0 0
        %817 = vmatpush1.bf16.msra.mxu0 0
        %818 = vmatprep.subr.bf16.mxu0 0
        %819 = vmatpush1.bf16.msra.mxu0 0
        %820 = vmatprep.subr.bf16.mxu0 0
        %821 = vmatpush1.bf16.msra.mxu0 0
        %822 = vmatprep.subr.bf16.mxu0 0
        %823 = vmatpush1.bf16.msra.mxu0 0
        %824 = vmatprep.mubr.bf16.mxu0 0
        %825 = vmatmul.mubr.bf16.gmra.mrb[0].mxu0 %v786
        %v826 = vpop.f32.mrb[0].mxu0
        %v827 = vadd.f32 0.0, %v826
        %v828 = vpop.f32.mrb[0].mxu0
        %v829 = vpop.f32.mrb[0].mxu0
        %v830 = vpop.f32.mrb[0].mxu0
        %831 = vdwg.mxu0
        %v833 = vsel %vm464, %v782, 0
        %v836 = vsel %vm788, %v461, 0
        %838 = vmatprep.subr.bf16.mxu0 0
        %839 = vmatpush1.bf16.msra.mxu0 %v836
        %840 = vmatprep.subr.bf16.mxu0 0
        %841 = vmatpush1.bf16.msra.mxu0 0
        %842 = vmatprep.subr.bf16.mxu0 0
        %843 = vmatpush1.bf16.msra.mxu0 0
        %844 = vmatprep.subr.bf16.mxu0 0
        %845 = vmatpush1.bf16.msra.mxu0 0
        %846 = vmatprep.subr.bf16.mxu0 0
        %847 = vmatpush1.bf16.msra.mxu0 0
        %848 = vmatprep.subr.bf16.mxu0 0
        %849 = vmatpush1.bf16.msra.mxu0 0
        %850 = vmatprep.subr.bf16.mxu0 0
        %851 = vmatpush1.bf16.msra.mxu0 0
        %852 = vmatprep.subr.bf16.mxu0 0
        %853 = vmatpush1.bf16.msra.mxu0 0
        %854 = vmatprep.subr.bf16.mxu0 0
        %855 = vmatpush1.bf16.msra.mxu0 0
        %856 = vmatprep.subr.bf16.mxu0 0
        %857 = vmatpush1.bf16.msra.mxu0 0
        %858 = vmatprep.subr.bf16.mxu0 0
        %859 = vmatpush1.bf16.msra.mxu0 0
        %860 = vmatprep.subr.bf16.mxu0 0
        %861 = vmatpush1.bf16.msra.mxu0 0
        %862 = vmatprep.subr.bf16.mxu0 0
        %863 = vmatpush1.bf16.msra.mxu0 0
        %864 = vmatprep.subr.bf16.mxu0 0
        %865 = vmatpush1.bf16.msra.mxu0 0
        %866 = vmatprep.subr.bf16.mxu0 0
        %867 = vmatpush1.bf16.msra.mxu0 0
        %868 = vmatprep.subr.bf16.mxu0 0
        %869 = vmatpush1.bf16.msra.mxu0 0
        %870 = vmatprep.mubr.bf16.mxu0 0
        %871 = vmatmul.mubr.bf16.gmra.mrb[0].mxu0 %v833
        %v872 = vpop.f32.mrb[0].mxu0
        %v873 = vadd.f32 0.0, %v872
        %v874 = vpop.f32.mrb[0].mxu0
        %v875 = vpop.f32.mrb[0].mxu0
        %v876 = vpop.f32.mrb[0].mxu0
        %877 = vdwg.mxu0
        %v879 = vsel %vm464, %v783, 0
        %v882 = vsel %vm788, %v462, 0
        %884 = vmatprep.subr.bf16.mxu0 0
        %885 = vmatpush1.bf16.msra.mxu0 %v882
        %886 = vmatprep.subr.bf16.mxu0 0
        %887 = vmatpush1.bf16.msra.mxu0 0
        %888 = vmatprep.subr.bf16.mxu0 0
        %889 = vmatpush1.bf16.msra.mxu0 0
        %890 = vmatprep.subr.bf16.mxu0 0
        %891 = vmatpush1.bf16.msra.mxu0 0
        %892 = vmatprep.subr.bf16.mxu0 0
        %893 = vmatpush1.bf16.msra.mxu0 0
        %894 = vmatprep.subr.bf16.mxu0 0
        %895 = vmatpush1.bf16.msra.mxu0 0
        %896 = vmatprep.subr.bf16.mxu0 0
        %897 = vmatpush1.bf16.msra.mxu0 0
        %898 = vmatprep.subr.bf16.mxu0 0
        %899 = vmatpush1.bf16.msra.mxu0 0
        %900 = vmatprep.subr.bf16.mxu0 0
        %901 = vmatpush1.bf16.msra.mxu0 0
        %902 = vmatprep.subr.bf16.mxu0 0
        %903 = vmatpush1.bf16.msra.mxu0 0
        %904 = vmatprep.subr.bf16.mxu0 0
        %905 = vmatpush1.bf16.msra.mxu0 0
        %906 = vmatprep.subr.bf16.mxu0 0
        %907 = vmatpush1.bf16.msra.mxu0 0
        %908 = vmatprep.subr.bf16.mxu0 0
        %909 = vmatpush1.bf16.msra.mxu0 0
        %910 = vmatprep.subr.bf16.mxu0 0
        %911 = vmatpush1.bf16.msra.mxu0 0
        %912 = vmatprep.subr.bf16.mxu0 0
        %913 = vmatpush1.bf16.msra.mxu0 0
        %914 = vmatprep.subr.bf16.mxu0 0
        %915 = vmatpush1.bf16.msra.mxu0 0
        %916 = vmatprep.mubr.bf16.mxu0 0
        %917 = vmatmul.mubr.bf16.gmra.mrb[0].mxu0 %v879
        %v918 = vpop.f32.mrb[0].mxu0
        %v919 = vadd.f32 0.0, %v918
        %v920 = vpop.f32.mrb[0].mxu0
        %v921 = vpop.f32.mrb[0].mxu0
        %v922 = vpop.f32.mrb[0].mxu0
        %923 = vdwg.mxu0
        %v925 = vsel %vm464, %v784, 0
        %v928 = vsel %vm788, %v463, 0
        %930 = vmatprep.subr.bf16.mxu0 0
        %931 = vmatpush1.bf16.msra.mxu0 %v928
        %932 = vmatprep.subr.bf16.mxu0 0
        %933 = vmatpush1.bf16.msra.mxu0 0
        %934 = vmatprep.subr.bf16.mxu0 0
        %935 = vmatpush1.bf16.msra.mxu0 0
        %936 = vmatprep.subr.bf16.mxu0 0
        %937 = vmatpush1.bf16.msra.mxu0 0
        %938 = vmatprep.subr.bf16.mxu0 0
        %939 = vmatpush1.bf16.msra.mxu0 0
        %940 = vmatprep.subr.bf16.mxu0 0
        %941 = vmatpush1.bf16.msra.mxu0 0
        %942 = vmatprep.subr.bf16.mxu0 0
        %943 = vmatpush1.bf16.msra.mxu0 0
        %944 = vmatprep.subr.bf16.mxu0 0
        %945 = vmatpush1.bf16.msra.mxu0 0
        %946 = vmatprep.subr.bf16.mxu0 0
        %947 = vmatpush1.bf16.msra.mxu0 0
        %948 = vmatprep.subr.bf16.mxu0 0
        %949 = vmatpush1.bf16.msra.mxu0 0
        %950 = vmatprep.subr.bf16.mxu0 0
        %951 = vmatpush1.bf16.msra.mxu0 0
        %952 = vmatprep.subr.bf16.mxu0 0
        %953 = vmatpush1.bf16.msra.mxu0 0
        %954 = vmatprep.subr.bf16.mxu0 0
        %955 = vmatpush1.bf16.msra.mxu0 0
        %956 = vmatprep.subr.bf16.mxu0 0
        %957 = vmatpush1.bf16.msra.mxu0 0
        %958 = vmatprep.subr.bf16.mxu0 0
        %959 = vmatpush1.bf16.msra.mxu0 0
        %960 = vmatprep.subr.bf16.mxu0 0
        %961 = vmatpush1.bf16.msra.mxu0 0
        %962 = vmatprep.mubr.bf16.mxu0 0
        %963 = vmatmul.mubr.bf16.gmra.mrb[0].mxu0 %v925
        %v964 = vpop.f32.mrb[0].mxu0
        %v965 = vadd.f32 0.0, %v964
        %v966 = vpop.f32.mrb[0].mxu0
        %v967 = vpop.f32.mrb[0].mxu0
        %v968 = vpop.f32.mrb[0].mxu0
        %969 = vdwg.mxu0
        %v970 = vadd.f32 %v777, %v827
        %v971 = vadd.f32 %v778, %v873
        %v972 = vadd.f32 %v779, %v919
        %v973 = vadd.f32 %v780, %v965
        %974 = vst.msk [vmem:[#allocation4] sm:$0xff] %vm464, %v970
        %975 = vst.msk [vmem:[#allocation4 + $0x8] sm:$0xff] %vm464, %v971
        %976 = vst.msk [vmem:[#allocation4 + $0x10] sm:$0xff] %vm464, %v972
        %977 = vst.msk [vmem:[#allocation4 + $0x18] sm:$0xff] %vm464, %v973
        %978 = vst.msk [vmem:[#allocation2] sm:$0xff] %vm748, %v676
        %979 = vst.msk [vmem:[#allocation2 + $0x8] sm:$0xff] %vm748, %v677
        %980 = vst.msk [vmem:[#allocation2 + $0x10] sm:$0xff] %vm748, %v678
        %981 = vst.msk [vmem:[#allocation2 + $0x18] sm:$0xff] %vm748, %v679
        // Predicated region
        $region65: #{tpu_custom_call.1} parent=43 // pred_check
          %p982 = pneg %p434
        $region66: #{tpu_custom_call.1} parent=43 // pred_check_branch
          %984 = sbr.rel (%p982) target = $region68
        $region67: #{tpu_custom_call.1} parent=43 // pred_region
          %v985 = vld [vmem:[#allocation3] sm:$0xff]
          %v986 = vld [vmem:[#allocation3 + $0x8] sm:$0xff]
          %v987 = vld [vmem:[#allocation3 + $0x10] sm:$0xff]
          %v988 = vld [vmem:[#allocation3 + $0x18] sm:$0xff]
          %v989 = vrcp.pop %v985
          %v990 = vrcp.pop %v986
          %v991 = vrcp.pop %v987
          %v992 = vrcp.pop %v988
          %v993 = vld [vmem:[#allocation4] sm:$0xff]
          %v994 = vld [vmem:[#allocation4 + $0x8] sm:$0xff]
          %v995 = vld [vmem:[#allocation4 + $0x10] sm:$0xff]
          %v996 = vld [vmem:[#allocation4 + $0x18] sm:$0xff]
          %998 = vset.pattern.permute.xlu0 0
          %999 = vperm.xlu0 %998, %v989
          %v1000 = vpop.permute.xlu0 %999
          %1003 = vset.pattern.permute.xlu0 0
          %1004 = vperm.xlu0 %1003, %v990
          %v1005 = vpop.permute.xlu0 %1004
          %1008 = vset.pattern.permute.xlu0 0
          %1009 = vperm.xlu0 %1008, %v991
          %v1010 = vpop.permute.xlu0 %1009
          %1013 = vset.pattern.permute.xlu0 0
          %1014 = vperm.xlu0 %1013, %v992
          %v1015 = vpop.permute.xlu0 %1014
          %v1017 = vmul.f32 %v993, %v1000
          %v1018 = vmul.f32 %v994, %v1005
          %v1019 = vmul.f32 %v995, %v1010
          %v1020 = vmul.f32 %v996, %v1015
          %1021 = vst.msk [vmem:[#allocation5] sm:$0xff] %vm464, %v1017
          %1023 = vrot.lane.b32.xlu0 %v1018, 8
          %v1024 = vpop.permute.xlu0 %1023
          %vm1026 = vcmask 130112
          %1027 = vst.msk [vmem:[#allocation5] sm:$0xff] %vm1026, %v1024
          %1029 = vrot.lane.b32.xlu0 %v1019, 16
          %v1030 = vpop.permute.xlu0 %1029
          %vm1032 = vcmask 195712
          %1033 = vst.msk [vmem:[#allocation5] sm:$0xff] %vm1032, %v1030
          %1035 = vrot.lane.b32.xlu0 %v1020, 24
          %v1036 = vpop.permute.xlu0 %1035
          %vm1038 = vcmask 261312
          %1039 = vst.msk [vmem:[#allocation5] sm:$0xff] %vm1038, %v1036
          %v1040 = vld [vmem:[#allocation5] sm:$0xff]
          %v1041 = vpack.c.bf16 %v1040, %v1040
          %v1042 = vld [vmem:[#allocation12] sm:$0xf]
          %v1043 = vld [vmem:[#allocation12 + $0x4] sm:$0xf]
          %v1044 = vld [vmem:[#allocation12 + $0x8] sm:$0xf]
          %v1045 = vld [vmem:[#allocation12 + $0xc] sm:$0xf]
          %v1046 = vld [vmem:[%s5] sm:$0x1]
          %v1048 = vlaneseq
          %v1049 = vshrl.u32 %v1048, 7
          %v1050 = vsub.s32 0, %v1049
          %v1051 = vrot.slane %v1046, %v1050
          %v1057 = vunpack.c.l.b16 %v1042
          %v1058 = vunpack.c.l.b16 %v1043
          %v1059 = vunpack.c.l.b16 %v1044
          %v1060 = vunpack.c.l.b16 %v1045
          %v1061 = vpack.c.b16 %v1058, %v1057
          %v1062 = vpack.c.b16 %v1060, %v1059
          %vm1065 = vcmask 261120
          %v1067 = vsel %vm1065, %v1041, 0
          %1069 = vmatprep.subr.bf16.mxu0 0
          %1070 = vmatpush1.bf16.msra.mxu0 %v1061
          %1071 = vmatprep.subr.bf16.mxu0 0
          %1072 = vmatpush1.bf16.msra.mxu0 %v1062
          %1073 = vmatprep.subr.bf16.mxu0 0
          %1074 = vmatpush1.bf16.msra.mxu0 0
          %1075 = vmatprep.subr.bf16.mxu0 0
          %1076 = vmatpush1.bf16.msra.mxu0 0
          %1077 = vmatprep.subr.bf16.mxu0 0
          %1078 = vmatpush1.bf16.msra.mxu0 0
          %1079 = vmatprep.subr.bf16.mxu0 0
          %1080 = vmatpush1.bf16.msra.mxu0 0
          %1081 = vmatprep.subr.bf16.mxu0 0
          %1082 = vmatpush1.bf16.msra.mxu0 0
          %1083 = vmatprep.subr.bf16.mxu0 0
          %1084 = vmatpush1.bf16.msra.mxu0 0
          %1085 = vmatprep.subr.bf16.mxu0 0
          %1086 = vmatpush1.bf16.msra.mxu0 0
          %1087 = vmatprep.subr.bf16.mxu0 0
          %1088 = vmatpush1.bf16.msra.mxu0 0
          %1089 = vmatprep.subr.bf16.mxu0 0
          %1090 = vmatpush1.bf16.msra.mxu0 0
          %1091 = vmatprep.subr.bf16.mxu0 0
          %1092 = vmatpush1.bf16.msra.mxu0 0
          %1093 = vmatprep.subr.bf16.mxu0 0
          %1094 = vmatpush1.bf16.msra.mxu0 0
          %1095 = vmatprep.subr.bf16.mxu0 0
          %1096 = vmatpush1.bf16.msra.mxu0 0
          %1097 = vmatprep.subr.bf16.mxu0 0
          %1098 = vmatpush1.bf16.msra.mxu0 0
          %1099 = vmatprep.subr.bf16.mxu0 0
          %1100 = vmatpush1.bf16.msra.mxu0 0
          %1101 = vmatprep.mubr.bf16.mxu0 0
          %1102 = vmatmul.mubr.bf16.gmra.mrb[0].mxu0 %v1067
          %v1103 = vpop.f32.mrb[0].mxu0
          %v1104 = vadd.f32 %v1051, %v1103
          %v1105 = vpop.f32.mrb[0].mxu0
          %v1106 = vpop.f32.mrb[0].mxu0
          %v1107 = vpop.f32.mrb[0].mxu0
          %1108 = vdwg.mxu0
          %1109 = vst.msk [vmem:[%s420] sm:$0xff] %vm1065, %v1104
        $region68: #{tpu_custom_call.1} parent=43 // pred_fallthru
          _
        %s1110 = sand.u32 %s212, 1
        %s1111 = scalar_lea.sflag [#allocation8], %s1110
        %s1112 = sand.u32 %s212, 1
        %s1113 = smul.addr %s1112, 8
        %s1114 = scalar_lea.vmem [#allocation14], %s1113
        // Predicated region
        $region69: #{tpu_custom_call.1} parent=43 // pred_check
          %p1115 = pneg %p222
        $region70: #{tpu_custom_call.1} parent=43 // pred_check_branch
          %1117 = sbr.rel (%p1115) target = $region72
        $region71: #{tpu_custom_call.1} parent=43 // pred_region
          %s1119 = ssub.s32 128, 128
          %1120 = vsyncadd %s1111, %s1119
          %s1121 = sadd.s32 %s33, %s32
          %s1122 = smul.addr %s1121, 128
          %s1123 = scalar_lea.hbm %s6, %s1122
          %s1125 = sshll.u32 %s1114, 4
          %s1126 = int_to_ptr.vmem [resolvable:$true] %s1125
          %1128 = dma.vmem_to_hbm [thread:$0]  %s1126, 128, %s1123, %s1111
        $region72: #{tpu_custom_call.1} parent=43 // pred_fallthru
          _
      $region44: #{tpu_custom_call.1} parent=5 // pred_fallthru
        _
      %p1129 = scmp.le.s32.totalorder 2, %s22
      // Predicated region
      $region73: #{tpu_custom_call.1} parent=5 // pred_check
        %p1130 = pneg %p1129
      $region74: #{tpu_custom_call.1} parent=5 // pred_check_branch
        %1132 = sbr.rel (%p1130) target = $region76
      $region75: #{tpu_custom_call.1} parent=5 // pred_region
        %s1133 = ssub.s32 %s22, 2
        // Predicated region
        $region77: #{tpu_custom_call.1} parent=75 // pred_check
          %p1134 = pneg %p228
        $region78: #{tpu_custom_call.1} parent=75 // pred_check_branch
          %1136 = sbr.rel (%p1134) target = $region80
        $region79: #{tpu_custom_call.1} parent=75 // pred_region
          %s1137 = sand.u32 %s213, 1
          %s1138 = scalar_lea.sflag [#allocation8], %s1137
          %s1139 = sand.u32 %s213, 1
          %s1140 = smul.addr %s1139, 8
          %s1141 = scalar_lea.vmem [#allocation14], %s1140
          %1142 = dma.done %s1138, 128
        $region80: #{tpu_custom_call.1} parent=75 // pred_fallthru
          _
      $region76: #{tpu_custom_call.1} parent=5 // pred_fallthru
        _
    $region6: #{tpu_custom_call.1} parent=1 // loop_footer
      %s26 = sadd.s32 1, %s22
    $region7: #{tpu_custom_call.1} parent=1 // loop_footer_branch
      %21 = sbr.rel target = $region3
    $region8: #{tpu_custom_call.1} parent=1 // loop_exit
      _
    %1143 = vsyncpa [#allocation7], 1
    %s1144 = scalar_lea.sflag [#allocation7], 1
    %1145 = vsyncpa %s1144, 1
    %1146 = vsyncpa [#allocation10], 1
    %s1147 = scalar_lea.sflag [#allocation10], 1
    %1148 = vsyncpa %s1147, 1
    %1149 = vsyncpa [#allocation13], 1
    %1150 = vsyncpa [#allocation8], 1
    %s1151 = scalar_lea.sflag [#allocation8], 1
    %1152 = vsyncpa %s1151, 1

</llo_original>
